<compile_context>
chip_gen: v7x
topology: tpu7x:2x2x1
jax: 0.10.0
libtpu: 0.0.40
codegen_flags: <defaults>
</compile_context>

<pallas_src>
import numpy as np
import jax
import jax.numpy as jnp
from jax.experimental import pallas as pl
from jax.experimental.pallas import tpu as pltpu


def lstm_kernel(x_ref, wb_ref, out_w_ref, out_ref):
    """Single-invocation kernel (no grid); everything resident in VMEM/vregs.

    x_ref     : (seq, 1)   float32 input column
    wb_ref    : (H+2, 4H)  fused slab: rows [0:H]   = W_hh^T
                                        row  [H]     = W_ih^T (input_size == 1)
                                        row  [H+1]   = b_ih + b_hh
    out_w_ref : (H+1, WB)  fused slab: rows [0:H]   = W_out^T zero-padded to WB
                                        row  [H]     = b_out  zero-padded to WB
    out_ref   : (1, P)     lane-dense packed output: [h | c | pred | zero pad]
    """
    H = wb_ref.shape[1] // 4
    seq = x_ref.shape[0]
    P = out_ref.shape[1]

    # Load the fused weight slab once; W_hh (4 vregs at H=32) stays resident
    # across all timesteps.
    whh = wb_ref[0:H, :]            # (H, 4H)
    wih = wb_ref[H:H + 1, :]        # (1, 4H)
    b = wb_ref[H + 1:H + 2, :]      # (1, 4H)

    # Hoist the input projection off the recurrent dependency chain:
    # pre[t] = x[t] * W_ih^T + b for all timesteps, a single (seq, 4H)
    # broadcast multiply + add (one f32 vreg at seq=8, 4H=128).
    pre = x_ref[...] * wih + b      # (seq, 4H)

    h = jnp.zeros((1, H), jnp.float32)
    c = jnp.zeros((1, H), jnp.float32)

    # seq is static and small: fully unroll with *static* indices so the rows
    # of `pre` stay in vregs and the scheduler sees the whole serial chain.
    # TODO(synk): for long sequences switch to a partially-unrolled
    # lax.fori_loop with `pre` staged in a VMEM scratch buffer.
    for t in range(seq):
        # Only the recurrent projection sits on the serial chain.
        gates = pre[t:t + 1, :] + jnp.dot(h, whh,
                                          preferred_element_type=jnp.float32)
        # Two full-width EUP passes over the (1, 4H) row, then static slices
        # (gate order i, f, g, o per PyTorch).
        sig = 0.5 * jnp.tanh(0.5 * gates) + 0.5    # exact sigmoid via tanh
        tnh = jnp.tanh(gates)
        i_g = sig[:, 0:H]
        f_g = sig[:, H:2 * H]
        g_g = tnh[:, 2 * H:3 * H]
        o_g = sig[:, 3 * H:4 * H]
        c = f_g * c + i_g * g_g
        h = o_g * jnp.tanh(c)

    # Linear layer on the last hidden state (== predictions[-1]).  W_out/b_out
    # live in one zero-padded lane-dense slab, so lanes >= OUT of pred_row are
    # exactly zero and double as the output padding.
    pred_row = jnp.dot(h, out_w_ref[0:H, :],
                       preferred_element_type=jnp.float32) + out_w_ref[H:H + 1, :]

    # Build the packed row in registers and issue ONE full-width store:
    # [h (H) | c (H) | pred (OUT) | zeros].
    out_ref[...] = jnp.concatenate([h, c, pred_row[:, 0:P - 2 * H]], axis=1)


def lstm_forward(x, params):
    """Returns (predictions[-1], (h_n, c_n)) matching the PyTorch module."""
    w_ih, w_hh, b_ih, b_hh, w_out, b_out = params
    seq, input_size = x.shape
    H = w_hh.shape[1]
    OUT = w_out.shape[0]
    # The module's docstring fixes input_size == 1; the kernel specializes on
    # it (input projection becomes a broadcast instead of a K=1 matmul).
    assert input_size == 1, "kernel is specialized for input_size == 1"

    # Packed, lane-dense output row (multiple of 128 lanes).
    P = max(128, ((2 * H + OUT + 127) // 128) * 128)
    # Lane width of the output-projection slab: wide enough that its zero
    # padding also provides the zero tail of the packed output row.
    WB = max(128, ((P - 2 * H + 127) // 128) * 128)

    # Fused weight slabs: 2 DMA descriptors for all 6 parameters.
    wb = jnp.concatenate([
        w_hh.T,                                   # (H, 4H)
        w_ih.T.reshape(1, 4 * H),                 # (1, 4H)
        (b_ih + b_hh).reshape(1, 4 * H),          # (1, 4H)
    ], axis=0).astype(jnp.float32)                # (H+2, 4H)

    out_w = jnp.zeros((H + 1, WB), jnp.float32)
    out_w = out_w.at[0:H, 0:OUT].set(w_out.T)
    out_w = out_w.at[H, 0:OUT].set(b_out)

    x_col = x.reshape(seq, 1).astype(jnp.float32)

    vmem = pl.BlockSpec(memory_space=pltpu.MemorySpace.VMEM)

    out = pl.pallas_call(
        lstm_kernel,
        out_shape=jax.ShapeDtypeStruct((1, P), jnp.float32),
        in_specs=[vmem, vmem, vmem],
        out_specs=vmem,
    )(x_col, wb, out_w)

    h_n = out[:, 0:H]
    c_n = out[:, H:2 * H]
    pred = out[0, 2 * H:2 * H + OUT]
    # Match PyTorch return shapes: predictions[-1] -> (OUT,), hidden -> (1,1,H) x2
    return pred, (h_n.reshape(1, 1, H), c_n.reshape(1, 1, H))


def lstm_reference(x, params):
    """Pure-JAX reference implementing the same PyTorch semantics."""
    w_ih, w_hh, b_ih, b_hh, w_out, b_out = params
    H = w_hh.shape[1]
    h = jnp.zeros((1, H), jnp.float32)
    c = jnp.zeros((1, H), jnp.float32)
    for t in range(x.shape[0]):
        gates = x[t:t + 1] @ w_ih.T + h @ w_hh.T + b_ih + b_hh
        i_g = jax.nn.sigmoid(gates[:, 0:H])
        f_g = jax.nn.sigmoid(gates[:, H:2 * H])
        g_g = jnp.tanh(gates[:, 2 * H:3 * H])
        o_g = jax.nn.sigmoid(gates[:, 3 * H:4 * H])
        c = f_g * c + i_g * g_g
        h = o_g * jnp.tanh(c)
    pred = h @ w_out.T + b_out
    return pred[0], (h.reshape(1, 1, H), c.reshape(1, 1, H))


def init_params(key, input_size, hidden_size, output_size):
    """Deterministic init mimicking PyTorch's default uniform(-k, k)."""
    k_lstm = 1.0 / np.sqrt(hidden_size)
    k_lin = 1.0 / np.sqrt(hidden_size)
    ks = jax.random.split(key, 6)
    w_ih = jax.random.uniform(ks[0], (4 * hidden_size, input_size),
                              jnp.float32, -k_lstm, k_lstm)
    w_hh = jax.random.uniform(ks[1], (4 * hidden_size, hidden_size),
                              jnp.float32, -k_lstm, k_lstm)
    b_ih = jax.random.uniform(ks[2], (4 * hidden_size,),
                              jnp.float32, -k_lstm, k_lstm)
    b_hh = jax.random.uniform(ks[3], (4 * hidden_size,),
                              jnp.float32, -k_lstm, k_lstm)
    w_out = jax.random.uniform(ks[4], (output_size, hidden_size),
                               jnp.float32, -k_lin, k_lin)
    b_out = jax.random.uniform(ks[5], (output_size,),
                               jnp.float32, -k_lin, k_lin)
    return (w_ih, w_hh, b_ih, b_hh, w_out, b_out)


if __name__ == "__main__":
    seq_len = 8
    input_size = 1      # "will be 1 in this example" per the module docstring
    hidden_size = 32
    output_size = 4

    key = jax.random.PRNGKey(0)
    kx, kp = jax.random.split(key)
    x = jax.random.normal(kx, (seq_len, input_size), jnp.float32)
    params = init_params(kp, input_size, hidden_size, output_size)

    pred, (h_n, c_n) = lstm_forward(x, params)
    jax.block_until_ready((pred, h_n, c_n))

    ref_pred, (ref_h, ref_c) = lstm_reference(x, params)
    # tanh-based sigmoid may deviate slightly from the exp-based reference.
    np.testing.assert_allclose(np.asarray(pred), np.asarray(ref_pred),
                               rtol=1e-3, atol=1e-4)
    np.testing.assert_allclose(np.asarray(h_n), np.asarray(ref_h),
                               rtol=1e-3, atol=1e-4)
    np.testing.assert_allclose(np.asarray(c_n), np.asarray(ref_c),
                               rtol=1e-3, atol=1e-4)

    print("KERNEL_OK")
</pallas_src>

<mosaic_0001>
module attributes {stable_mosaic.version = 11 : i64} {
  func.func @lstm_kernel(%arg0: memref<8x1xf32, #tpu.memory_space<vmem>>, %arg1: memref<34x128xf32, #tpu.memory_space<vmem>>, %arg2: memref<33x128xf32, #tpu.memory_space<vmem>>, %arg3: memref<1x128xf32, #tpu.memory_space<vmem>>) attributes {dimension_semantics = [], scalar_prefetch = 0 : i64, scratch_operands = 0 : i64, tpu.core_type = #tpu.core_type<tc>} {
    %c0 = arith.constant 0 : index
    %c0_0 = arith.constant 0 : index
    %0 = vector.load %arg1[%c0, %c0_0] : memref<34x128xf32, #tpu.memory_space<vmem>>, vector<32x128xf32>
    %c32 = arith.constant 32 : index
    %c0_1 = arith.constant 0 : index
    %1 = vector.load %arg1[%c32, %c0_1] : memref<34x128xf32, #tpu.memory_space<vmem>>, vector<1x128xf32>
    %c33 = arith.constant 33 : index
    %c0_2 = arith.constant 0 : index
    %2 = vector.load %arg1[%c33, %c0_2] : memref<34x128xf32, #tpu.memory_space<vmem>>, vector<1x128xf32>
    %c0_3 = arith.constant 0 : index
    %c0_4 = arith.constant 0 : index
    %3 = vector.load %arg0[%c0_3, %c0_4] : memref<8x1xf32, #tpu.memory_space<vmem>>, vector<8x1xf32>
    %4 = vector.broadcast %3 : vector<8x1xf32> to vector<8x128xf32>
    %5 = vector.broadcast %1 : vector<1x128xf32> to vector<8x128xf32>
    %6 = arith.mulf %4, %5 : vector<8x128xf32>
    %7 = vector.broadcast %2 : vector<1x128xf32> to vector<8x128xf32>
    %8 = arith.addf %6, %7 : vector<8x128xf32>
    %cst = arith.constant 0.000000e+00 : f32
    %9 = vector.broadcast %cst : f32 to vector<1x32xf32>
    %cst_5 = arith.constant 0.000000e+00 : f32
    %10 = vector.broadcast %cst_5 : f32 to vector<1x32xf32>
    %11 = vector.extract_strided_slice %8 {offsets = [0, 0], sizes = [1, 128], strides = [1, 1]} : vector<8x128xf32> to vector<1x128xf32>
    %cst_6 = arith.constant dense<0.000000e+00> : vector<1x128xf32>
    %12 = tpu.matmul %9, %0, %cst_6 {dimension_numbers = #tpu.dot_dimension_numbers<[1], [0], [0], [1], [0, 0, 1, 1], [], []>} : vector<1x32xf32>, vector<32x128xf32>, vector<1x128xf32> -> vector<1x128xf32>
    %13 = arith.addf %11, %12 : vector<1x128xf32>
    %cst_7 = arith.constant 5.000000e-01 : f32
    %14 = vector.broadcast %cst_7 : f32 to vector<1x128xf32>
    %15 = arith.mulf %14, %13 : vector<1x128xf32>
    %16 = math.tanh %15 : vector<1x128xf32>
    %cst_8 = arith.constant 5.000000e-01 : f32
    %17 = vector.broadcast %cst_8 : f32 to vector<1x128xf32>
    %18 = arith.mulf %17, %16 : vector<1x128xf32>
    %cst_9 = arith.constant 5.000000e-01 : f32
    %19 = vector.broadcast %cst_9 : f32 to vector<1x128xf32>
    %20 = arith.addf %18, %19 : vector<1x128xf32>
    %21 = math.tanh %13 : vector<1x128xf32>
    %22 = vector.extract_strided_slice %20 {offsets = [0, 0], sizes = [1, 32], strides = [1, 1]} : vector<1x128xf32> to vector<1x32xf32>
    %23 = vector.extract_strided_slice %20 {offsets = [0, 32], sizes = [1, 32], strides = [1, 1]} : vector<1x128xf32> to vector<1x32xf32>
    %24 = vector.extract_strided_slice %21 {offsets = [0, 64], sizes = [1, 32], strides = [1, 1]} : vector<1x128xf32> to vector<1x32xf32>
    %25 = vector.extract_strided_slice %20 {offsets = [0, 96], sizes = [1, 32], strides = [1, 1]} : vector<1x128xf32> to vector<1x32xf32>
    %26 = arith.mulf %23, %10 : vector<1x32xf32>
    %27 = arith.mulf %22, %24 : vector<1x32xf32>
    %28 = arith.addf %26, %27 : vector<1x32xf32>
    %29 = math.tanh %28 : vector<1x32xf32>
    %30 = arith.mulf %25, %29 : vector<1x32xf32>
    %31 = vector.extract_strided_slice %8 {offsets = [1, 0], sizes = [1, 128], strides = [1, 1]} : vector<8x128xf32> to vector<1x128xf32>
    %cst_10 = arith.constant dense<0.000000e+00> : vector<1x128xf32>
    %32 = tpu.matmul %30, %0, %cst_10 {dimension_numbers = #tpu.dot_dimension_numbers<[1], [0], [0], [1], [0, 0, 1, 1], [], []>} : vector<1x32xf32>, vector<32x128xf32>, vector<1x128xf32> -> vector<1x128xf32>
    %33 = arith.addf %31, %32 : vector<1x128xf32>
    %cst_11 = arith.constant 5.000000e-01 : f32
    %34 = vector.broadcast %cst_11 : f32 to vector<1x128xf32>
    %35 = arith.mulf %34, %33 : vector<1x128xf32>
    %36 = math.tanh %35 : vector<1x128xf32>
    %cst_12 = arith.constant 5.000000e-01 : f32
    %37 = vector.broadcast %cst_12 : f32 to vector<1x128xf32>
    %38 = arith.mulf %37, %36 : vector<1x128xf32>
    %cst_13 = arith.constant 5.000000e-01 : f32
    %39 = vector.broadcast %cst_13 : f32 to vector<1x128xf32>
    %40 = arith.addf %38, %39 : vector<1x128xf32>
    %41 = math.tanh %33 : vector<1x128xf32>
    %42 = vector.extract_strided_slice %40 {offsets = [0, 0], sizes = [1, 32], strides = [1, 1]} : vector<1x128xf32> to vector<1x32xf32>
    %43 = vector.extract_strided_slice %40 {offsets = [0, 32], sizes = [1, 32], strides = [1, 1]} : vector<1x128xf32> to vector<1x32xf32>
    %44 = vector.extract_strided_slice %41 {offsets = [0, 64], sizes = [1, 32], strides = [1, 1]} : vector<1x128xf32> to vector<1x32xf32>
    %45 = vector.extract_strided_slice %40 {offsets = [0, 96], sizes = [1, 32], strides = [1, 1]} : vector<1x128xf32> to vector<1x32xf32>
    %46 = arith.mulf %43, %28 : vector<1x32xf32>
    %47 = arith.mulf %42, %44 : vector<1x32xf32>
    %48 = arith.addf %46, %47 : vector<1x32xf32>
    %49 = math.tanh %48 : vector<1x32xf32>
    %50 = arith.mulf %45, %49 : vector<1x32xf32>
    %51 = vector.extract_strided_slice %8 {offsets = [2, 0], sizes = [1, 128], strides = [1, 1]} : vector<8x128xf32> to vector<1x128xf32>
    %cst_14 = arith.constant dense<0.000000e+00> : vector<1x128xf32>
    %52 = tpu.matmul %50, %0, %cst_14 {dimension_numbers = #tpu.dot_dimension_numbers<[1], [0], [0], [1], [0, 0, 1, 1], [], []>} : vector<1x32xf32>, vector<32x128xf32>, vector<1x128xf32> -> vector<1x128xf32>
    %53 = arith.addf %51, %52 : vector<1x128xf32>
    %cst_15 = arith.constant 5.000000e-01 : f32
    %54 = vector.broadcast %cst_15 : f32 to vector<1x128xf32>
    %55 = arith.mulf %54, %53 : vector<1x128xf32>
    %56 = math.tanh %55 : vector<1x128xf32>
    %cst_16 = arith.constant 5.000000e-01 : f32
    %57 = vector.broadcast %cst_16 : f32 to vector<1x128xf32>
    %58 = arith.mulf %57, %56 : vector<1x128xf32>
    %cst_17 = arith.constant 5.000000e-01 : f32
    %59 = vector.broadcast %cst_17 : f32 to vector<1x128xf32>
    %60 = arith.addf %58, %59 : vector<1x128xf32>
    %61 = math.tanh %53 : vector<1x128xf32>
    %62 = vector.extract_strided_slice %60 {offsets = [0, 0], sizes = [1, 32], strides = [1, 1]} : vector<1x128xf32> to vector<1x32xf32>
    %63 = vector.extract_strided_slice %60 {offsets = [0, 32], sizes = [1, 32], strides = [1, 1]} : vector<1x128xf32> to vector<1x32xf32>
    %64 = vector.extract_strided_slice %61 {offsets = [0, 64], sizes = [1, 32], strides = [1, 1]} : vector<1x128xf32> to vector<1x32xf32>
    %65 = vector.extract_strided_slice %60 {offsets = [0, 96], sizes = [1, 32], strides = [1, 1]} : vector<1x128xf32> to vector<1x32xf32>
    %66 = arith.mulf %63, %48 : vector<1x32xf32>
    %67 = arith.mulf %62, %64 : vector<1x32xf32>
    %68 = arith.addf %66, %67 : vector<1x32xf32>
    %69 = math.tanh %68 : vector<1x32xf32>
    %70 = arith.mulf %65, %69 : vector<1x32xf32>
    %71 = vector.extract_strided_slice %8 {offsets = [3, 0], sizes = [1, 128], strides = [1, 1]} : vector<8x128xf32> to vector<1x128xf32>
    %cst_18 = arith.constant dense<0.000000e+00> : vector<1x128xf32>
    %72 = tpu.matmul %70, %0, %cst_18 {dimension_numbers = #tpu.dot_dimension_numbers<[1], [0], [0], [1], [0, 0, 1, 1], [], []>} : vector<1x32xf32>, vector<32x128xf32>, vector<1x128xf32> -> vector<1x128xf32>
    %73 = arith.addf %71, %72 : vector<1x128xf32>
    %cst_19 = arith.constant 5.000000e-01 : f32
    %74 = vector.broadcast %cst_19 : f32 to vector<1x128xf32>
    %75 = arith.mulf %74, %73 : vector<1x128xf32>
    %76 = math.tanh %75 : vector<1x128xf32>
    %cst_20 = arith.constant 5.000000e-01 : f32
    %77 = vector.broadcast %cst_20 : f32 to vector<1x128xf32>
    %78 = arith.mulf %77, %76 : vector<1x128xf32>
    %cst_21 = arith.constant 5.000000e-01 : f32
    %79 = vector.broadcast %cst_21 : f32 to vector<1x128xf32>
    %80 = arith.addf %78, %79 : vector<1x128xf32>
    %81 = math.tanh %73 : vector<1x128xf32>
    %82 = vector.extract_strided_slice %80 {offsets = [0, 0], sizes = [1, 32], strides = [1, 1]} : vector<1x128xf32> to vector<1x32xf32>
    %83 = vector.extract_strided_slice %80 {offsets = [0, 32], sizes = [1, 32], strides = [1, 1]} : vector<1x128xf32> to vector<1x32xf32>
    %84 = vector.extract_strided_slice %81 {offsets = [0, 64], sizes = [1, 32], strides = [1, 1]} : vector<1x128xf32> to vector<1x32xf32>
    %85 = vector.extract_strided_slice %80 {offsets = [0, 96], sizes = [1, 32], strides = [1, 1]} : vector<1x128xf32> to vector<1x32xf32>
    %86 = arith.mulf %83, %68 : vector<1x32xf32>
    %87 = arith.mulf %82, %84 : vector<1x32xf32>
    %88 = arith.addf %86, %87 : vector<1x32xf32>
    %89 = math.tanh %88 : vector<1x32xf32>
    %90 = arith.mulf %85, %89 : vector<1x32xf32>
    %91 = vector.extract_strided_slice %8 {offsets = [4, 0], sizes = [1, 128], strides = [1, 1]} : vector<8x128xf32> to vector<1x128xf32>
    %cst_22 = arith.constant dense<0.000000e+00> : vector<1x128xf32>
    %92 = tpu.matmul %90, %0, %cst_22 {dimension_numbers = #tpu.dot_dimension_numbers<[1], [0], [0], [1], [0, 0, 1, 1], [], []>} : vector<1x32xf32>, vector<32x128xf32>, vector<1x128xf32> -> vector<1x128xf32>
    %93 = arith.addf %91, %92 : vector<1x128xf32>
    %cst_23 = arith.constant 5.000000e-01 : f32
    %94 = vector.broadcast %cst_23 : f32 to vector<1x128xf32>
    %95 = arith.mulf %94, %93 : vector<1x128xf32>
    %96 = math.tanh %95 : vector<1x128xf32>
    %cst_24 = arith.constant 5.000000e-01 : f32
    %97 = vector.broadcast %cst_24 : f32 to vector<1x128xf32>
    %98 = arith.mulf %97, %96 : vector<1x128xf32>
    %cst_25 = arith.constant 5.000000e-01 : f32
    %99 = vector.broadcast %cst_25 : f32 to vector<1x128xf32>
    %100 = arith.addf %98, %99 : vector<1x128xf32>
    %101 = math.tanh %93 : vector<1x128xf32>
    %102 = vector.extract_strided_slice %100 {offsets = [0, 0], sizes = [1, 32], strides = [1, 1]} : vector<1x128xf32> to vector<1x32xf32>
    %103 = vector.extract_strided_slice %100 {offsets = [0, 32], sizes = [1, 32], strides = [1, 1]} : vector<1x128xf32> to vector<1x32xf32>
    %104 = vector.extract_strided_slice %101 {offsets = [0, 64], sizes = [1, 32], strides = [1, 1]} : vector<1x128xf32> to vector<1x32xf32>
    %105 = vector.extract_strided_slice %100 {offsets = [0, 96], sizes = [1, 32], strides = [1, 1]} : vector<1x128xf32> to vector<1x32xf32>
    %106 = arith.mulf %103, %88 : vector<1x32xf32>
    %107 = arith.mulf %102, %104 : vector<1x32xf32>
    %108 = arith.addf %106, %107 : vector<1x32xf32>
    %109 = math.tanh %108 : vector<1x32xf32>
    %110 = arith.mulf %105, %109 : vector<1x32xf32>
    %111 = vector.extract_strided_slice %8 {offsets = [5, 0], sizes = [1, 128], strides = [1, 1]} : vector<8x128xf32> to vector<1x128xf32>
    %cst_26 = arith.constant dense<0.000000e+00> : vector<1x128xf32>
    %112 = tpu.matmul %110, %0, %cst_26 {dimension_numbers = #tpu.dot_dimension_numbers<[1], [0], [0], [1], [0, 0, 1, 1], [], []>} : vector<1x32xf32>, vector<32x128xf32>, vector<1x128xf32> -> vector<1x128xf32>
    %113 = arith.addf %111, %112 : vector<1x128xf32>
    %cst_27 = arith.constant 5.000000e-01 : f32
    %114 = vector.broadcast %cst_27 : f32 to vector<1x128xf32>
    %115 = arith.mulf %114, %113 : vector<1x128xf32>
    %116 = math.tanh %115 : vector<1x128xf32>
    %cst_28 = arith.constant 5.000000e-01 : f32
    %117 = vector.broadcast %cst_28 : f32 to vector<1x128xf32>
    %118 = arith.mulf %117, %116 : vector<1x128xf32>
    %cst_29 = arith.constant 5.000000e-01 : f32
    %119 = vector.broadcast %cst_29 : f32 to vector<1x128xf32>
    %120 = arith.addf %118, %119 : vector<1x128xf32>
    %121 = math.tanh %113 : vector<1x128xf32>
    %122 = vector.extract_strided_slice %120 {offsets = [0, 0], sizes = [1, 32], strides = [1, 1]} : vector<1x128xf32> to vector<1x32xf32>
    %123 = vector.extract_strided_slice %120 {offsets = [0, 32], sizes = [1, 32], strides = [1, 1]} : vector<1x128xf32> to vector<1x32xf32>
    %124 = vector.extract_strided_slice %121 {offsets = [0, 64], sizes = [1, 32], strides = [1, 1]} : vector<1x128xf32> to vector<1x32xf32>
    %125 = vector.extract_strided_slice %120 {offsets = [0, 96], sizes = [1, 32], strides = [1, 1]} : vector<1x128xf32> to vector<1x32xf32>
    %126 = arith.mulf %123, %108 : vector<1x32xf32>
    %127 = arith.mulf %122, %124 : vector<1x32xf32>
    %128 = arith.addf %126, %127 : vector<1x32xf32>
    %129 = math.tanh %128 : vector<1x32xf32>
    %130 = arith.mulf %125, %129 : vector<1x32xf32>
    %131 = vector.extract_strided_slice %8 {offsets = [6, 0], sizes = [1, 128], strides = [1, 1]} : vector<8x128xf32> to vector<1x128xf32>
    %cst_30 = arith.constant dense<0.000000e+00> : vector<1x128xf32>
    %132 = tpu.matmul %130, %0, %cst_30 {dimension_numbers = #tpu.dot_dimension_numbers<[1], [0], [0], [1], [0, 0, 1, 1], [], []>} : vector<1x32xf32>, vector<32x128xf32>, vector<1x128xf32> -> vector<1x128xf32>
    %133 = arith.addf %131, %132 : vector<1x128xf32>
    %cst_31 = arith.constant 5.000000e-01 : f32
    %134 = vector.broadcast %cst_31 : f32 to vector<1x128xf32>
    %135 = arith.mulf %134, %133 : vector<1x128xf32>
    %136 = math.tanh %135 : vector<1x128xf32>
    %cst_32 = arith.constant 5.000000e-01 : f32
    %137 = vector.broadcast %cst_32 : f32 to vector<1x128xf32>
    %138 = arith.mulf %137, %136 : vector<1x128xf32>
    %cst_33 = arith.constant 5.000000e-01 : f32
    %139 = vector.broadcast %cst_33 : f32 to vector<1x128xf32>
    %140 = arith.addf %138, %139 : vector<1x128xf32>
    %141 = math.tanh %133 : vector<1x128xf32>
    %142 = vector.extract_strided_slice %140 {offsets = [0, 0], sizes = [1, 32], strides = [1, 1]} : vector<1x128xf32> to vector<1x32xf32>
    %143 = vector.extract_strided_slice %140 {offsets = [0, 32], sizes = [1, 32], strides = [1, 1]} : vector<1x128xf32> to vector<1x32xf32>
    %144 = vector.extract_strided_slice %141 {offsets = [0, 64], sizes = [1, 32], strides = [1, 1]} : vector<1x128xf32> to vector<1x32xf32>
    %145 = vector.extract_strided_slice %140 {offsets = [0, 96], sizes = [1, 32], strides = [1, 1]} : vector<1x128xf32> to vector<1x32xf32>
    %146 = arith.mulf %143, %128 : vector<1x32xf32>
    %147 = arith.mulf %142, %144 : vector<1x32xf32>
    %148 = arith.addf %146, %147 : vector<1x32xf32>
    %149 = math.tanh %148 : vector<1x32xf32>
    %150 = arith.mulf %145, %149 : vector<1x32xf32>
    %151 = vector.extract_strided_slice %8 {offsets = [7, 0], sizes = [1, 128], strides = [1, 1]} : vector<8x128xf32> to vector<1x128xf32>
    %cst_34 = arith.constant dense<0.000000e+00> : vector<1x128xf32>
    %152 = tpu.matmul %150, %0, %cst_34 {dimension_numbers = #tpu.dot_dimension_numbers<[1], [0], [0], [1], [0, 0, 1, 1], [], []>} : vector<1x32xf32>, vector<32x128xf32>, vector<1x128xf32> -> vector<1x128xf32>
    %153 = arith.addf %151, %152 : vector<1x128xf32>
    %cst_35 = arith.constant 5.000000e-01 : f32
    %154 = vector.broadcast %cst_35 : f32 to vector<1x128xf32>
    %155 = arith.mulf %154, %153 : vector<1x128xf32>
    %156 = math.tanh %155 : vector<1x128xf32>
    %cst_36 = arith.constant 5.000000e-01 : f32
    %157 = vector.broadcast %cst_36 : f32 to vector<1x128xf32>
    %158 = arith.mulf %157, %156 : vector<1x128xf32>
    %cst_37 = arith.constant 5.000000e-01 : f32
    %159 = vector.broadcast %cst_37 : f32 to vector<1x128xf32>
    %160 = arith.addf %158, %159 : vector<1x128xf32>
    %161 = math.tanh %153 : vector<1x128xf32>
    %162 = vector.extract_strided_slice %160 {offsets = [0, 0], sizes = [1, 32], strides = [1, 1]} : vector<1x128xf32> to vector<1x32xf32>
    %163 = vector.extract_strided_slice %160 {offsets = [0, 32], sizes = [1, 32], strides = [1, 1]} : vector<1x128xf32> to vector<1x32xf32>
    %164 = vector.extract_strided_slice %161 {offsets = [0, 64], sizes = [1, 32], strides = [1, 1]} : vector<1x128xf32> to vector<1x32xf32>
    %165 = vector.extract_strided_slice %160 {offsets = [0, 96], sizes = [1, 32], strides = [1, 1]} : vector<1x128xf32> to vector<1x32xf32>
    %166 = arith.mulf %163, %148 : vector<1x32xf32>
    %167 = arith.mulf %162, %164 : vector<1x32xf32>
    %168 = arith.addf %166, %167 : vector<1x32xf32>
    %169 = math.tanh %168 : vector<1x32xf32>
    %170 = arith.mulf %165, %169 : vector<1x32xf32>
    %c0_38 = arith.constant 0 : index
    %c0_39 = arith.constant 0 : index
    %171 = vector.load %arg2[%c0_38, %c0_39] : memref<33x128xf32, #tpu.memory_space<vmem>>, vector<32x128xf32>
    %cst_40 = arith.constant dense<0.000000e+00> : vector<1x128xf32>
    %172 = tpu.matmul %170, %171, %cst_40 {dimension_numbers = #tpu.dot_dimension_numbers<[1], [0], [0], [1], [0, 0, 1, 1], [], []>} : vector<1x32xf32>, vector<32x128xf32>, vector<1x128xf32> -> vector<1x128xf32>
    %c32_41 = arith.constant 32 : index
    %c0_42 = arith.constant 0 : index
    %173 = vector.load %arg2[%c32_41, %c0_42] : memref<33x128xf32, #tpu.memory_space<vmem>>, vector<1x128xf32>
    %174 = arith.addf %172, %173 : vector<1x128xf32>
    %175 = vector.extract_strided_slice %174 {offsets = [0, 0], sizes = [1, 64], strides = [1, 1]} : vector<1x128xf32> to vector<1x64xf32>
    %176 = tpu.concatenate %170, %168, %175 in 1 : vector<1x32xf32>, vector<1x32xf32>, vector<1x64xf32> -> vector<1x128xf32>
    %c0_43 = arith.constant 0 : index
    %c0_44 = arith.constant 0 : index
    %177 = vector.load %arg3[%c0_43, %c0_44] : memref<1x128xf32, #tpu.memory_space<vmem>>, vector<1x128xf32>
    tpu.vector_store %arg3[%c0_43, %c0_44], %176 {strides = array<i32>} : memref<1x128xf32, #tpu.memory_space<vmem>>, vector<1x128xf32>,
    return
  }
}

</mosaic_0001>

<llo_original>
// kernel: tpu_custom_call.1
$region0: #{tpu_custom_call.1}
  #allocation0 [shape = 'u32[]', space=smem, size = 0x4, offset = 0x4, fixed_abs, tag = 'smem constant byte address 0x4 - core index']
  #allocation1 [shape = 'u32[144,128]{1,0:T(1,128)}', space=vmem, size = 0x12000, scoped, tag = 'internal scratch']
  %s0 = inlined_call_operand.vmem [shape: f32[8,1], index: 0, kind: input, shape index: {}]
  %s1 = inlined_call_operand.hbm [shape: f32[34,128], index: 1, kind: input, shape index: {}]
  %s2 = inlined_call_operand.hbm [shape: f32[33,128], index: 2, kind: input, shape index: {}]
  %s3 = inlined_call_operand.hbm [shape: f32[1,128], index: 3, kind: output, shape index: {}]
  %s4 = sld [smem:[#allocation0]]
  $region30: #{tpu_custom_call.1} parent=0
    _
  %s6 = ssub.s32 1, %s4
  %s7 = scalar_select 0, %s6, %s4
  $region1: #{tpu_custom_call.1} parent=0
    #allocation2 [shape = 'u8[20480]{0}', space=vmem, size = 0x5000, scoped, tag = 'input window, operand 1, single buffered']
    #allocation3 [shape = 's32[1]{0}', space=sflag, size = 0x4, scoped, tag = 'scoped memory for tpu_custom_call.1']
    #allocation4 [shape = 's32[1]{0}', space=sflag, size = 0x4, scoped, tag = 'scoped memory for tpu_custom_call.1']
    #allocation5 [shape = 'u8[20480]{0}', space=vmem, size = 0x5000, scoped, tag = 'input window, operand 2, single buffered']
    #allocation6 [shape = 's32[1]{0}', space=sflag, size = 0x4, scoped, tag = 'scoped memory for tpu_custom_call.1']
    #allocation7 [shape = 'u8[512]{0}', space=vmem, size = 0x400, scoped, tag = 'output window, operand 0, single buffered']
    %8 = vsyncpa [#allocation3], 0
    %9 = vsyncpa [#allocation6], 0
    %10 = vsyncpa [#allocation4], 0
    // Predicated region
    $region2: #{tpu_custom_call.1} parent=1 // pred_check
      _
    $region3: #{tpu_custom_call.1} parent=1 // pred_check_branch
      %12 = sbr.rel (0) target = $region5
    $region4: #{tpu_custom_call.1} parent=1 // pred_region
      _
    $region5: #{tpu_custom_call.1} parent=1 // pred_fallthru
      _
    // Predicated region
    $region6: #{tpu_custom_call.1} parent=1 // pred_check
      _
    $region7: #{tpu_custom_call.1} parent=1 // pred_check_branch
      %14 = sbr.rel (0) target = $region9
    $region8: #{tpu_custom_call.1} parent=1 // pred_region
      %s16 = ssub.s32 640, 640
      %17 = vsyncadd [#allocation3], %s16
      %s18 = sshll.u32 [#allocation2], 4
      %s19 = int_to_ptr.vmem [resolvable:$true] %s18
      %24 = dma.hbm_to_vmem [thread:$0]  %s1, 640, %s19, [#allocation3], 128, 128, 8
    $region9: #{tpu_custom_call.1} parent=1 // pred_fallthru
      _
    // Predicated region
    $region10: #{tpu_custom_call.1} parent=1 // pred_check
      _
    $region11: #{tpu_custom_call.1} parent=1 // pred_check_branch
      %26 = sbr.rel (0) target = $region13
    $region12: #{tpu_custom_call.1} parent=1 // pred_region
      %s28 = ssub.s32 640, 640
      %29 = vsyncadd [#allocation6], %s28
      %s30 = sshll.u32 [#allocation5], 4
      %s31 = int_to_ptr.vmem [resolvable:$true] %s30
      %36 = dma.hbm_to_vmem [thread:$0]  %s2, 640, %s31, [#allocation6], 128, 128, 8
    $region13: #{tpu_custom_call.1} parent=1 // pred_fallthru
      _
    // Predicated region
    $region14: #{tpu_custom_call.1} parent=1 // pred_check
      _
    $region15: #{tpu_custom_call.1} parent=1 // pred_check_branch
      %38 = sbr.rel (0) target = $region17
    $region16: #{tpu_custom_call.1} parent=1 // pred_region
      %39 = dma.done [#allocation3], 640
    $region17: #{tpu_custom_call.1} parent=1 // pred_fallthru
      _
    // Predicated region
    $region18: #{tpu_custom_call.1} parent=1 // pred_check
      _
    $region19: #{tpu_custom_call.1} parent=1 // pred_check_branch
      %41 = sbr.rel (0) target = $region21
    $region20: #{tpu_custom_call.1} parent=1 // pred_region
      %42 = dma.done [#allocation6], 640
    $region21: #{tpu_custom_call.1} parent=1 // pred_fallthru
      _
    %v43 = vld [vmem:[#allocation2] sm:$0xff]
    %v44 = vld [vmem:[#allocation2 + $0x8] sm:$0xff]
    %v45 = vld [vmem:[#allocation2 + $0x10] sm:$0xff]
    %v46 = vld [vmem:[#allocation2 + $0x18] sm:$0xff]
    %v47 = vld [vmem:[#allocation2 + $0x20] sm:$0x1]
    %v48 = vld [vmem:[#allocation2 + $0x21] sm:$0x1]
    %v49 = vld [vmem:[%s0] sm:$0xff]
    %51 = vset.pattern.permute.xlu0 0
    %52 = vperm.xlu0 %51, %v49
    %v53 = vpop.permute.xlu0 %52
    %v55 = vlaneseq
    %v56 = vshrl.u32 %v55, 7
    %v57 = vsub.s32 0, %v56
    %v58 = vrot.slane %v47, %v57
    %v59 = vmul.f32 %v53, %v58
    %v60 = vlaneseq
    %v61 = vshrl.u32 %v60, 7
    %v62 = vsub.s32 0, %v61
    %v63 = vrot.slane %v48, %v62
    %v64 = vadd.f32 %v59, %v63
    %vm65 = vcmask 261120
    %v67 = vsel %vm65, 0.0, 0
    %69 = vmatprep.subr.mxu0 0.0
    %70 = vmatpush1.msra.mxu0 %v43
    %71 = vmatprep.subr.mxu0 0.0
    %72 = vmatpush1.msra.mxu0 %v44
    %73 = vmatprep.subr.mxu0 0.0
    %74 = vmatpush1.msra.mxu0 %v45
    %75 = vmatprep.subr.mxu0 0.0
    %76 = vmatpush1.msra.mxu0 %v46
    %77 = vmatprep.subr.mxu0 0.0
    %78 = vmatpush1.msra.mxu0 0.0
    %79 = vmatprep.subr.mxu0 0.0
    %80 = vmatpush1.msra.mxu0 0.0
    %81 = vmatprep.subr.mxu0 0.0
    %82 = vmatpush1.msra.mxu0 0.0
    %83 = vmatprep.subr.mxu0 0.0
    %84 = vmatpush1.msra.mxu0 0.0
    %85 = vmatprep.subr.mxu0 0.0
    %86 = vmatpush1.msra.mxu0 0.0
    %87 = vmatprep.subr.mxu0 0.0
    %88 = vmatpush1.msra.mxu0 0.0
    %89 = vmatprep.subr.mxu0 0.0
    %90 = vmatpush1.msra.mxu0 0.0
    %91 = vmatprep.subr.mxu0 0.0
    %92 = vmatpush1.msra.mxu0 0.0
    %93 = vmatprep.subr.mxu0 0.0
    %94 = vmatpush1.msra.mxu0 0.0
    %95 = vmatprep.subr.mxu0 0.0
    %96 = vmatpush1.msra.mxu0 0.0
    %97 = vmatprep.subr.mxu0 0.0
    %98 = vmatpush1.msra.mxu0 0.0
    %99 = vmatprep.subr.mxu0 0.0
    %100 = vmatpush1.msra.mxu0 0.0
    %101 = vmatprep.subr.mxu0 0.0
    %102 = vmatpush1.msra.mxu0 0.0
    %103 = vmatprep.subr.mxu0 0.0
    %104 = vmatpush1.msra.mxu0 0.0
    %105 = vmatprep.subr.mxu0 0.0
    %106 = vmatpush1.msra.mxu0 0.0
    %107 = vmatprep.subr.mxu0 0.0
    %108 = vmatpush1.msra.mxu0 0.0
    %109 = vmatprep.subr.mxu0 0.0
    %110 = vmatpush1.msra.mxu0 0.0
    %111 = vmatprep.subr.mxu0 0.0
    %112 = vmatpush1.msra.mxu0 0.0
    %113 = vmatprep.subr.mxu0 0.0
    %114 = vmatpush1.msra.mxu0 0.0
    %115 = vmatprep.subr.mxu0 0.0
    %116 = vmatpush1.msra.mxu0 0.0
    %117 = vmatprep.subr.mxu0 0.0
    %118 = vmatpush1.msra.mxu0 0.0
    %119 = vmatprep.subr.mxu0 0.0
    %120 = vmatpush1.msra.mxu0 0.0
    %121 = vmatprep.subr.mxu0 0.0
    %122 = vmatpush1.msra.mxu0 0.0
    %123 = vmatprep.subr.mxu0 0.0
    %124 = vmatpush1.msra.mxu0 0.0
    %125 = vmatprep.subr.mxu0 0.0
    %126 = vmatpush1.msra.mxu0 0.0
    %127 = vmatprep.subr.mxu0 0.0
    %128 = vmatpush1.msra.mxu0 0.0
    %129 = vmatprep.subr.mxu0 0.0
    %130 = vmatpush1.msra.mxu0 0.0
    %131 = vmatprep.subr.mxu0 0.0
    %132 = vmatpush1.msra.mxu0 0.0
    %133 = vmatprep.mubr.f32.mxu0 0.0
    %134 = vmatmul.mubr.f32.gmra.mrb[0].mxu0 %v67
    %v135 = vpop.f32.mrb[0].mxu0
    %v136 = vadd.f32 0.0, %v135
    %v137 = vpop.f32.mrb[0].mxu0
    %138 = vdwg.mxu0
    %v139 = vadd.f32 %v64, %v136
    %v140 = vmul.f32 %v139, 0.5
    %v141 = vtanh.pop %v140
    %v142 = vmul.f32 %v141, 0.5
    %v143 = vadd.f32 %v142, 0.5
    %v144 = vtanh.pop %v139
    %v145 = vmul.f32 %v143, 0.0
    %147 = vrot.lane.b32.xlu0 %v144, 64
    %v148 = vpop.permute.xlu0 %147
    %v150 = vmul.f32 %v143, %v148
    %152 = vrot.lane.b32.xlu0 %v150, 32
    %v153 = vpop.permute.xlu0 %152
    %v155 = vadd.f32 %v145, %v153
    %v156 = vtanh.pop %v155
    %158 = vrot.lane.b32.xlu0 %v156, 64
    %v159 = vpop.permute.xlu0 %158
    %v161 = vmul.f32 %v143, %v159
    %163 = vrot.lane.b32.xlu0 %v161, 32
    %v164 = vpop.permute.xlu0 %163
    %v165 = vsel %vm65, %v164, 0
    %167 = vmatprep.subr.mxu0 0.0
    %168 = vmatpush1.msra.mxu0 %v43
    %169 = vmatprep.subr.mxu0 0.0
    %170 = vmatpush1.msra.mxu0 %v44
    %171 = vmatprep.subr.mxu0 0.0
    %172 = vmatpush1.msra.mxu0 %v45
    %173 = vmatprep.subr.mxu0 0.0
    %174 = vmatpush1.msra.mxu0 %v46
    %175 = vmatprep.subr.mxu0 0.0
    %176 = vmatpush1.msra.mxu0 0.0
    %177 = vmatprep.subr.mxu0 0.0
    %178 = vmatpush1.msra.mxu0 0.0
    %179 = vmatprep.subr.mxu0 0.0
    %180 = vmatpush1.msra.mxu0 0.0
    %181 = vmatprep.subr.mxu0 0.0
    %182 = vmatpush1.msra.mxu0 0.0
    %183 = vmatprep.subr.mxu0 0.0
    %184 = vmatpush1.msra.mxu0 0.0
    %185 = vmatprep.subr.mxu0 0.0
    %186 = vmatpush1.msra.mxu0 0.0
    %187 = vmatprep.subr.mxu0 0.0
    %188 = vmatpush1.msra.mxu0 0.0
    %189 = vmatprep.subr.mxu0 0.0
    %190 = vmatpush1.msra.mxu0 0.0
    %191 = vmatprep.subr.mxu0 0.0
    %192 = vmatpush1.msra.mxu0 0.0
    %193 = vmatprep.subr.mxu0 0.0
    %194 = vmatpush1.msra.mxu0 0.0
    %195 = vmatprep.subr.mxu0 0.0
    %196 = vmatpush1.msra.mxu0 0.0
    %197 = vmatprep.subr.mxu0 0.0
    %198 = vmatpush1.msra.mxu0 0.0
    %199 = vmatprep.subr.mxu0 0.0
    %200 = vmatpush1.msra.mxu0 0.0
    %201 = vmatprep.subr.mxu0 0.0
    %202 = vmatpush1.msra.mxu0 0.0
    %203 = vmatprep.subr.mxu0 0.0
    %204 = vmatpush1.msra.mxu0 0.0
    %205 = vmatprep.subr.mxu0 0.0
    %206 = vmatpush1.msra.mxu0 0.0
    %207 = vmatprep.subr.mxu0 0.0
    %208 = vmatpush1.msra.mxu0 0.0
    %209 = vmatprep.subr.mxu0 0.0
    %210 = vmatpush1.msra.mxu0 0.0
    %211 = vmatprep.subr.mxu0 0.0
    %212 = vmatpush1.msra.mxu0 0.0
    %213 = vmatprep.subr.mxu0 0.0
    %214 = vmatpush1.msra.mxu0 0.0
    %215 = vmatprep.subr.mxu0 0.0
    %216 = vmatpush1.msra.mxu0 0.0
    %217 = vmatprep.subr.mxu0 0.0
    %218 = vmatpush1.msra.mxu0 0.0
    %219 = vmatprep.subr.mxu0 0.0
    %220 = vmatpush1.msra.mxu0 0.0
    %221 = vmatprep.subr.mxu0 0.0
    %222 = vmatpush1.msra.mxu0 0.0
    %223 = vmatprep.subr.mxu0 0.0
    %224 = vmatpush1.msra.mxu0 0.0
    %225 = vmatprep.subr.mxu0 0.0
    %226 = vmatpush1.msra.mxu0 0.0
    %227 = vmatprep.subr.mxu0 0.0
    %228 = vmatpush1.msra.mxu0 0.0
    %229 = vmatprep.subr.mxu0 0.0
    %230 = vmatpush1.msra.mxu0 0.0
    %231 = vmatprep.mubr.f32.mxu0 0.0
    %232 = vmatmul.mubr.f32.gmra.mrb[0].mxu0 %v165
    %v233 = vpop.f32.mrb[0].mxu0
    %v234 = vadd.f32 0.0, %v233
    %v235 = vpop.f32.mrb[0].mxu0
    %236 = vdwg.mxu0
    %v238 = vrot.slane %v234, 7
    %v240 = vadd.f32 %v64, %v238
    %v241 = vmul.f32 %v240, 0.5
    %v242 = vtanh.pop %v241
    %v243 = vmul.f32 %v242, 0.5
    %v244 = vadd.f32 %v243, 0.5
    %v245 = vtanh.pop %v240
    %v247 = vrot.slane %v155, 7
    %v249 = vmul.f32 %v244, %v247
    %251 = vrot.lane.b32.xlu0 %v245, 64
    %v252 = vpop.permute.xlu0 %251
    %v254 = vmul.f32 %v244, %v252
    %256 = vrot.lane.b32.xlu0 %v254, 32
    %v257 = vpop.permute.xlu0 %256
    %v259 = vadd.f32 %v249, %v257
    %v260 = vtanh.pop %v259
    %262 = vrot.lane.b32.xlu0 %v260, 64
    %v263 = vpop.permute.xlu0 %262
    %v265 = vmul.f32 %v244, %v263
    %v267 = vrot.slane %v265, 1
    %268 = vrot.lane.b32.xlu0 %v267, 32
    %v269 = vpop.permute.xlu0 %268
    %v270 = vsel %vm65, %v269, 0
    %272 = vmatprep.subr.mxu0 0.0
    %273 = vmatpush1.msra.mxu0 %v43
    %274 = vmatprep.subr.mxu0 0.0
    %275 = vmatpush1.msra.mxu0 %v44
    %276 = vmatprep.subr.mxu0 0.0
    %277 = vmatpush1.msra.mxu0 %v45
    %278 = vmatprep.subr.mxu0 0.0
    %279 = vmatpush1.msra.mxu0 %v46
    %280 = vmatprep.subr.mxu0 0.0
    %281 = vmatpush1.msra.mxu0 0.0
    %282 = vmatprep.subr.mxu0 0.0
    %283 = vmatpush1.msra.mxu0 0.0
    %284 = vmatprep.subr.mxu0 0.0
    %285 = vmatpush1.msra.mxu0 0.0
    %286 = vmatprep.subr.mxu0 0.0
    %287 = vmatpush1.msra.mxu0 0.0
    %288 = vmatprep.subr.mxu0 0.0
    %289 = vmatpush1.msra.mxu0 0.0
    %290 = vmatprep.subr.mxu0 0.0
    %291 = vmatpush1.msra.mxu0 0.0
    %292 = vmatprep.subr.mxu0 0.0
    %293 = vmatpush1.msra.mxu0 0.0
    %294 = vmatprep.subr.mxu0 0.0
    %295 = vmatpush1.msra.mxu0 0.0
    %296 = vmatprep.subr.mxu0 0.0
    %297 = vmatpush1.msra.mxu0 0.0
    %298 = vmatprep.subr.mxu0 0.0
    %299 = vmatpush1.msra.mxu0 0.0
    %300 = vmatprep.subr.mxu0 0.0
    %301 = vmatpush1.msra.mxu0 0.0
    %302 = vmatprep.subr.mxu0 0.0
    %303 = vmatpush1.msra.mxu0 0.0
    %304 = vmatprep.subr.mxu0 0.0
    %305 = vmatpush1.msra.mxu0 0.0
    %306 = vmatprep.subr.mxu0 0.0
    %307 = vmatpush1.msra.mxu0 0.0
    %308 = vmatprep.subr.mxu0 0.0
    %309 = vmatpush1.msra.mxu0 0.0
    %310 = vmatprep.subr.mxu0 0.0
    %311 = vmatpush1.msra.mxu0 0.0
    %312 = vmatprep.subr.mxu0 0.0
    %313 = vmatpush1.msra.mxu0 0.0
    %314 = vmatprep.subr.mxu0 0.0
    %315 = vmatpush1.msra.mxu0 0.0
    %316 = vmatprep.subr.mxu0 0.0
    %317 = vmatpush1.msra.mxu0 0.0
    %318 = vmatprep.subr.mxu0 0.0
    %319 = vmatpush1.msra.mxu0 0.0
    %320 = vmatprep.subr.mxu0 0.0
    %321 = vmatpush1.msra.mxu0 0.0
    %322 = vmatprep.subr.mxu0 0.0
    %323 = vmatpush1.msra.mxu0 0.0
    %324 = vmatprep.subr.mxu0 0.0
    %325 = vmatpush1.msra.mxu0 0.0
    %326 = vmatprep.subr.mxu0 0.0
    %327 = vmatpush1.msra.mxu0 0.0
    %328 = vmatprep.subr.mxu0 0.0
    %329 = vmatpush1.msra.mxu0 0.0
    %330 = vmatprep.subr.mxu0 0.0
    %331 = vmatpush1.msra.mxu0 0.0
    %332 = vmatprep.subr.mxu0 0.0
    %333 = vmatpush1.msra.mxu0 0.0
    %334 = vmatprep.subr.mxu0 0.0
    %335 = vmatpush1.msra.mxu0 0.0
    %336 = vmatprep.mubr.f32.mxu0 0.0
    %337 = vmatmul.mubr.f32.gmra.mrb[0].mxu0 %v270
    %v338 = vpop.f32.mrb[0].mxu0
    %v339 = vadd.f32 0.0, %v338
    %v340 = vpop.f32.mrb[0].mxu0
    %341 = vdwg.mxu0
    %v343 = vrot.slane %v339, 6
    %v345 = vadd.f32 %v64, %v343
    %v346 = vmul.f32 %v345, 0.5
    %v347 = vtanh.pop %v346
    %v348 = vmul.f32 %v347, 0.5
    %v349 = vadd.f32 %v348, 0.5
    %v350 = vtanh.pop %v345
    %v352 = vrot.slane %v259, 7
    %v354 = vmul.f32 %v349, %v352
    %356 = vrot.lane.b32.xlu0 %v350, 64
    %v357 = vpop.permute.xlu0 %356
    %v359 = vmul.f32 %v349, %v357
    %361 = vrot.lane.b32.xlu0 %v359, 32
    %v362 = vpop.permute.xlu0 %361
    %v364 = vadd.f32 %v354, %v362
    %v365 = vtanh.pop %v364
    %367 = vrot.lane.b32.xlu0 %v365, 64
    %v368 = vpop.permute.xlu0 %367
    %v370 = vmul.f32 %v349, %v368
    %v372 = vrot.slane %v370, 2
    %373 = vrot.lane.b32.xlu0 %v372, 32
    %v374 = vpop.permute.xlu0 %373
    %v375 = vsel %vm65, %v374, 0
    %377 = vmatprep.subr.mxu0 0.0
    %378 = vmatpush1.msra.mxu0 %v43
    %379 = vmatprep.subr.mxu0 0.0
    %380 = vmatpush1.msra.mxu0 %v44
    %381 = vmatprep.subr.mxu0 0.0
    %382 = vmatpush1.msra.mxu0 %v45
    %383 = vmatprep.subr.mxu0 0.0
    %384 = vmatpush1.msra.mxu0 %v46
    %385 = vmatprep.subr.mxu0 0.0
    %386 = vmatpush1.msra.mxu0 0.0
    %387 = vmatprep.subr.mxu0 0.0
    %388 = vmatpush1.msra.mxu0 0.0
    %389 = vmatprep.subr.mxu0 0.0
    %390 = vmatpush1.msra.mxu0 0.0
    %391 = vmatprep.subr.mxu0 0.0
    %392 = vmatpush1.msra.mxu0 0.0
    %393 = vmatprep.subr.mxu0 0.0
    %394 = vmatpush1.msra.mxu0 0.0
    %395 = vmatprep.subr.mxu0 0.0
    %396 = vmatpush1.msra.mxu0 0.0
    %397 = vmatprep.subr.mxu0 0.0
    %398 = vmatpush1.msra.mxu0 0.0
    %399 = vmatprep.subr.mxu0 0.0
    %400 = vmatpush1.msra.mxu0 0.0
    %401 = vmatprep.subr.mxu0 0.0
    %402 = vmatpush1.msra.mxu0 0.0
    %403 = vmatprep.subr.mxu0 0.0
    %404 = vmatpush1.msra.mxu0 0.0
    %405 = vmatprep.subr.mxu0 0.0
    %406 = vmatpush1.msra.mxu0 0.0
    %407 = vmatprep.subr.mxu0 0.0
    %408 = vmatpush1.msra.mxu0 0.0
    %409 = vmatprep.subr.mxu0 0.0
    %410 = vmatpush1.msra.mxu0 0.0
    %411 = vmatprep.subr.mxu0 0.0
    %412 = vmatpush1.msra.mxu0 0.0
    %413 = vmatprep.subr.mxu0 0.0
    %414 = vmatpush1.msra.mxu0 0.0
    %415 = vmatprep.subr.mxu0 0.0
    %416 = vmatpush1.msra.mxu0 0.0
    %417 = vmatprep.subr.mxu0 0.0
    %418 = vmatpush1.msra.mxu0 0.0
    %419 = vmatprep.subr.mxu0 0.0
    %420 = vmatpush1.msra.mxu0 0.0
    %421 = vmatprep.subr.mxu0 0.0
    %422 = vmatpush1.msra.mxu0 0.0
    %423 = vmatprep.subr.mxu0 0.0
    %424 = vmatpush1.msra.mxu0 0.0
    %425 = vmatprep.subr.mxu0 0.0
    %426 = vmatpush1.msra.mxu0 0.0
    %427 = vmatprep.subr.mxu0 0.0
    %428 = vmatpush1.msra.mxu0 0.0
    %429 = vmatprep.subr.mxu0 0.0
    %430 = vmatpush1.msra.mxu0 0.0
    %431 = vmatprep.subr.mxu0 0.0
    %432 = vmatpush1.msra.mxu0 0.0
    %433 = vmatprep.subr.mxu0 0.0
    %434 = vmatpush1.msra.mxu0 0.0
    %435 = vmatprep.subr.mxu0 0.0
    %436 = vmatpush1.msra.mxu0 0.0
    %437 = vmatprep.subr.mxu0 0.0
    %438 = vmatpush1.msra.mxu0 0.0
    %439 = vmatprep.subr.mxu0 0.0
    %440 = vmatpush1.msra.mxu0 0.0
    %441 = vmatprep.mubr.f32.mxu0 0.0
    %442 = vmatmul.mubr.f32.gmra.mrb[0].mxu0 %v375
    %v443 = vpop.f32.mrb[0].mxu0
    %v444 = vadd.f32 0.0, %v443
    %v445 = vpop.f32.mrb[0].mxu0
    %446 = vdwg.mxu0
    %v448 = vrot.slane %v444, 5
    %v450 = vadd.f32 %v64, %v448
    %v451 = vmul.f32 %v450, 0.5
    %v452 = vtanh.pop %v451
    %v453 = vmul.f32 %v452, 0.5
    %v454 = vadd.f32 %v453, 0.5
    %v455 = vtanh.pop %v450
    %v457 = vrot.slane %v364, 7
    %v459 = vmul.f32 %v454, %v457
    %461 = vrot.lane.b32.xlu0 %v455, 64
    %v462 = vpop.permute.xlu0 %461
    %v464 = vmul.f32 %v454, %v462
    %466 = vrot.lane.b32.xlu0 %v464, 32
    %v467 = vpop.permute.xlu0 %466
    %v469 = vadd.f32 %v459, %v467
    %v470 = vtanh.pop %v469
    %472 = vrot.lane.b32.xlu0 %v470, 64
    %v473 = vpop.permute.xlu0 %472
    %v475 = vmul.f32 %v454, %v473
    %v477 = vrot.slane %v475, 3
    %478 = vrot.lane.b32.xlu0 %v477, 32
    %v479 = vpop.permute.xlu0 %478
    %v480 = vsel %vm65, %v479, 0
    %482 = vmatprep.subr.mxu0 0.0
    %483 = vmatpush1.msra.mxu0 %v43
    %484 = vmatprep.subr.mxu0 0.0
    %485 = vmatpush1.msra.mxu0 %v44
    %486 = vmatprep.subr.mxu0 0.0
    %487 = vmatpush1.msra.mxu0 %v45
    %488 = vmatprep.subr.mxu0 0.0
    %489 = vmatpush1.msra.mxu0 %v46
    %490 = vmatprep.subr.mxu0 0.0
    %491 = vmatpush1.msra.mxu0 0.0
    %492 = vmatprep.subr.mxu0 0.0
    %493 = vmatpush1.msra.mxu0 0.0
    %494 = vmatprep.subr.mxu0 0.0
    %495 = vmatpush1.msra.mxu0 0.0
    %496 = vmatprep.subr.mxu0 0.0
    %497 = vmatpush1.msra.mxu0 0.0
    %498 = vmatprep.subr.mxu0 0.0
    %499 = vmatpush1.msra.mxu0 0.0
    %500 = vmatprep.subr.mxu0 0.0
    %501 = vmatpush1.msra.mxu0 0.0
    %502 = vmatprep.subr.mxu0 0.0
    %503 = vmatpush1.msra.mxu0 0.0
    %504 = vmatprep.subr.mxu0 0.0
    %505 = vmatpush1.msra.mxu0 0.0
    %506 = vmatprep.subr.mxu0 0.0
    %507 = vmatpush1.msra.mxu0 0.0
    %508 = vmatprep.subr.mxu0 0.0
    %509 = vmatpush1.msra.mxu0 0.0
    %510 = vmatprep.subr.mxu0 0.0
    %511 = vmatpush1.msra.mxu0 0.0
    %512 = vmatprep.subr.mxu0 0.0
    %513 = vmatpush1.msra.mxu0 0.0
    %514 = vmatprep.subr.mxu0 0.0
    %515 = vmatpush1.msra.mxu0 0.0
    %516 = vmatprep.subr.mxu0 0.0
    %517 = vmatpush1.msra.mxu0 0.0
    %518 = vmatprep.subr.mxu0 0.0
    %519 = vmatpush1.msra.mxu0 0.0
    %520 = vmatprep.subr.mxu0 0.0
    %521 = vmatpush1.msra.mxu0 0.0
    %522 = vmatprep.subr.mxu0 0.0
    %523 = vmatpush1.msra.mxu0 0.0
    %524 = vmatprep.subr.mxu0 0.0
    %525 = vmatpush1.msra.mxu0 0.0
    %526 = vmatprep.subr.mxu0 0.0
    %527 = vmatpush1.msra.mxu0 0.0
    %528 = vmatprep.subr.mxu0 0.0
    %529 = vmatpush1.msra.mxu0 0.0
    %530 = vmatprep.subr.mxu0 0.0
    %531 = vmatpush1.msra.mxu0 0.0
    %532 = vmatprep.subr.mxu0 0.0
    %533 = vmatpush1.msra.mxu0 0.0
    %534 = vmatprep.subr.mxu0 0.0
    %535 = vmatpush1.msra.mxu0 0.0
    %536 = vmatprep.subr.mxu0 0.0
    %537 = vmatpush1.msra.mxu0 0.0
    %538 = vmatprep.subr.mxu0 0.0
    %539 = vmatpush1.msra.mxu0 0.0
    %540 = vmatprep.subr.mxu0 0.0
    %541 = vmatpush1.msra.mxu0 0.0
    %542 = vmatprep.subr.mxu0 0.0
    %543 = vmatpush1.msra.mxu0 0.0
    %544 = vmatprep.subr.mxu0 0.0
    %545 = vmatpush1.msra.mxu0 0.0
    %546 = vmatprep.mubr.f32.mxu0 0.0
    %547 = vmatmul.mubr.f32.gmra.mrb[0].mxu0 %v480
    %v548 = vpop.f32.mrb[0].mxu0
    %v549 = vadd.f32 0.0, %v548
    %v550 = vpop.f32.mrb[0].mxu0
    %551 = vdwg.mxu0
    %v553 = vrot.slane %v549, 4
    %v555 = vadd.f32 %v64, %v553
    %v556 = vmul.f32 %v555, 0.5
    %v557 = vtanh.pop %v556
    %v558 = vmul.f32 %v557, 0.5
    %v559 = vadd.f32 %v558, 0.5
    %v560 = vtanh.pop %v555
    %v562 = vrot.slane %v469, 7
    %v564 = vmul.f32 %v559, %v562
    %566 = vrot.lane.b32.xlu0 %v560, 64
    %v567 = vpop.permute.xlu0 %566
    %v569 = vmul.f32 %v559, %v567
    %571 = vrot.lane.b32.xlu0 %v569, 32
    %v572 = vpop.permute.xlu0 %571
    %v574 = vadd.f32 %v564, %v572
    %v575 = vtanh.pop %v574
    %577 = vrot.lane.b32.xlu0 %v575, 64
    %v578 = vpop.permute.xlu0 %577
    %v580 = vmul.f32 %v559, %v578
    %v582 = vrot.slane %v580, 4
    %583 = vrot.lane.b32.xlu0 %v582, 32
    %v584 = vpop.permute.xlu0 %583
    %v585 = vsel %vm65, %v584, 0
    %587 = vmatprep.subr.mxu0 0.0
    %588 = vmatpush1.msra.mxu0 %v43
    %589 = vmatprep.subr.mxu0 0.0
    %590 = vmatpush1.msra.mxu0 %v44
    %591 = vmatprep.subr.mxu0 0.0
    %592 = vmatpush1.msra.mxu0 %v45
    %593 = vmatprep.subr.mxu0 0.0
    %594 = vmatpush1.msra.mxu0 %v46
    %595 = vmatprep.subr.mxu0 0.0
    %596 = vmatpush1.msra.mxu0 0.0
    %597 = vmatprep.subr.mxu0 0.0
    %598 = vmatpush1.msra.mxu0 0.0
    %599 = vmatprep.subr.mxu0 0.0
    %600 = vmatpush1.msra.mxu0 0.0
    %601 = vmatprep.subr.mxu0 0.0
    %602 = vmatpush1.msra.mxu0 0.0
    %603 = vmatprep.subr.mxu0 0.0
    %604 = vmatpush1.msra.mxu0 0.0
    %605 = vmatprep.subr.mxu0 0.0
    %606 = vmatpush1.msra.mxu0 0.0
    %607 = vmatprep.subr.mxu0 0.0
    %608 = vmatpush1.msra.mxu0 0.0
    %609 = vmatprep.subr.mxu0 0.0
    %610 = vmatpush1.msra.mxu0 0.0
    %611 = vmatprep.subr.mxu0 0.0
    %612 = vmatpush1.msra.mxu0 0.0
    %613 = vmatprep.subr.mxu0 0.0
    %614 = vmatpush1.msra.mxu0 0.0
    %615 = vmatprep.subr.mxu0 0.0
    %616 = vmatpush1.msra.mxu0 0.0
    %617 = vmatprep.subr.mxu0 0.0
    %618 = vmatpush1.msra.mxu0 0.0
    %619 = vmatprep.subr.mxu0 0.0
    %620 = vmatpush1.msra.mxu0 0.0
    %621 = vmatprep.subr.mxu0 0.0
    %622 = vmatpush1.msra.mxu0 0.0
    %623 = vmatprep.subr.mxu0 0.0
    %624 = vmatpush1.msra.mxu0 0.0
    %625 = vmatprep.subr.mxu0 0.0
    %626 = vmatpush1.msra.mxu0 0.0
    %627 = vmatprep.subr.mxu0 0.0
    %628 = vmatpush1.msra.mxu0 0.0
    %629 = vmatprep.subr.mxu0 0.0
    %630 = vmatpush1.msra.mxu0 0.0
    %631 = vmatprep.subr.mxu0 0.0
    %632 = vmatpush1.msra.mxu0 0.0
    %633 = vmatprep.subr.mxu0 0.0
    %634 = vmatpush1.msra.mxu0 0.0
    %635 = vmatprep.subr.mxu0 0.0
    %636 = vmatpush1.msra.mxu0 0.0
    %637 = vmatprep.subr.mxu0 0.0
    %638 = vmatpush1.msra.mxu0 0.0
    %639 = vmatprep.subr.mxu0 0.0
    %640 = vmatpush1.msra.mxu0 0.0
    %641 = vmatprep.subr.mxu0 0.0
    %642 = vmatpush1.msra.mxu0 0.0
    %643 = vmatprep.subr.mxu0 0.0
    %644 = vmatpush1.msra.mxu0 0.0
    %645 = vmatprep.subr.mxu0 0.0
    %646 = vmatpush1.msra.mxu0 0.0
    %647 = vmatprep.subr.mxu0 0.0
    %648 = vmatpush1.msra.mxu0 0.0
    %649 = vmatprep.subr.mxu0 0.0
    %650 = vmatpush1.msra.mxu0 0.0
    %651 = vmatprep.mubr.f32.mxu0 0.0
    %652 = vmatmul.mubr.f32.gmra.mrb[0].mxu0 %v585
    %v653 = vpop.f32.mrb[0].mxu0
    %v654 = vadd.f32 0.0, %v653
    %v655 = vpop.f32.mrb[0].mxu0
    %656 = vdwg.mxu0
    %v658 = vrot.slane %v654, 3
    %v660 = vadd.f32 %v64, %v658
    %v661 = vmul.f32 %v660, 0.5
    %v662 = vtanh.pop %v661
    %v663 = vmul.f32 %v662, 0.5
    %v664 = vadd.f32 %v663, 0.5
    %v665 = vtanh.pop %v660
    %v667 = vrot.slane %v574, 7
    %v669 = vmul.f32 %v664, %v667
    %671 = vrot.lane.b32.xlu0 %v665, 64
    %v672 = vpop.permute.xlu0 %671
    %v674 = vmul.f32 %v664, %v672
    %676 = vrot.lane.b32.xlu0 %v674, 32
    %v677 = vpop.permute.xlu0 %676
    %v679 = vadd.f32 %v669, %v677
    %v680 = vtanh.pop %v679
    %682 = vrot.lane.b32.xlu0 %v680, 64
    %v683 = vpop.permute.xlu0 %682
    %v685 = vmul.f32 %v664, %v683
    %v687 = vrot.slane %v685, 5
    %688 = vrot.lane.b32.xlu0 %v687, 32
    %v689 = vpop.permute.xlu0 %688
    %v690 = vsel %vm65, %v689, 0
    %692 = vmatprep.subr.mxu0 0.0
    %693 = vmatpush1.msra.mxu0 %v43
    %694 = vmatprep.subr.mxu0 0.0
    %695 = vmatpush1.msra.mxu0 %v44
    %696 = vmatprep.subr.mxu0 0.0
    %697 = vmatpush1.msra.mxu0 %v45
    %698 = vmatprep.subr.mxu0 0.0
    %699 = vmatpush1.msra.mxu0 %v46
    %700 = vmatprep.subr.mxu0 0.0
    %701 = vmatpush1.msra.mxu0 0.0
    %702 = vmatprep.subr.mxu0 0.0
    %703 = vmatpush1.msra.mxu0 0.0
    %704 = vmatprep.subr.mxu0 0.0
    %705 = vmatpush1.msra.mxu0 0.0
    %706 = vmatprep.subr.mxu0 0.0
    %707 = vmatpush1.msra.mxu0 0.0
    %708 = vmatprep.subr.mxu0 0.0
    %709 = vmatpush1.msra.mxu0 0.0
    %710 = vmatprep.subr.mxu0 0.0
    %711 = vmatpush1.msra.mxu0 0.0
    %712 = vmatprep.subr.mxu0 0.0
    %713 = vmatpush1.msra.mxu0 0.0
    %714 = vmatprep.subr.mxu0 0.0
    %715 = vmatpush1.msra.mxu0 0.0
    %716 = vmatprep.subr.mxu0 0.0
    %717 = vmatpush1.msra.mxu0 0.0
    %718 = vmatprep.subr.mxu0 0.0
    %719 = vmatpush1.msra.mxu0 0.0
    %720 = vmatprep.subr.mxu0 0.0
    %721 = vmatpush1.msra.mxu0 0.0
    %722 = vmatprep.subr.mxu0 0.0
    %723 = vmatpush1.msra.mxu0 0.0
    %724 = vmatprep.subr.mxu0 0.0
    %725 = vmatpush1.msra.mxu0 0.0
    %726 = vmatprep.subr.mxu0 0.0
    %727 = vmatpush1.msra.mxu0 0.0
    %728 = vmatprep.subr.mxu0 0.0
    %729 = vmatpush1.msra.mxu0 0.0
    %730 = vmatprep.subr.mxu0 0.0
    %731 = vmatpush1.msra.mxu0 0.0
    %732 = vmatprep.subr.mxu0 0.0
    %733 = vmatpush1.msra.mxu0 0.0
    %734 = vmatprep.subr.mxu0 0.0
    %735 = vmatpush1.msra.mxu0 0.0
    %736 = vmatprep.subr.mxu0 0.0
    %737 = vmatpush1.msra.mxu0 0.0
    %738 = vmatprep.subr.mxu0 0.0
    %739 = vmatpush1.msra.mxu0 0.0
    %740 = vmatprep.subr.mxu0 0.0
    %741 = vmatpush1.msra.mxu0 0.0
    %742 = vmatprep.subr.mxu0 0.0
    %743 = vmatpush1.msra.mxu0 0.0
    %744 = vmatprep.subr.mxu0 0.0
    %745 = vmatpush1.msra.mxu0 0.0
    %746 = vmatprep.subr.mxu0 0.0
    %747 = vmatpush1.msra.mxu0 0.0
    %748 = vmatprep.subr.mxu0 0.0
    %749 = vmatpush1.msra.mxu0 0.0
    %750 = vmatprep.subr.mxu0 0.0
    %751 = vmatpush1.msra.mxu0 0.0
    %752 = vmatprep.subr.mxu0 0.0
    %753 = vmatpush1.msra.mxu0 0.0
    %754 = vmatprep.subr.mxu0 0.0
    %755 = vmatpush1.msra.mxu0 0.0
    %756 = vmatprep.mubr.f32.mxu0 0.0
    %757 = vmatmul.mubr.f32.gmra.mrb[0].mxu0 %v690
    %v758 = vpop.f32.mrb[0].mxu0
    %v759 = vadd.f32 0.0, %v758
    %v760 = vpop.f32.mrb[0].mxu0
    %761 = vdwg.mxu0
    %v763 = vrot.slane %v759, 2
    %v765 = vadd.f32 %v64, %v763
    %v766 = vmul.f32 %v765, 0.5
    %v767 = vtanh.pop %v766
    %v768 = vmul.f32 %v767, 0.5
    %v769 = vadd.f32 %v768, 0.5
    %v770 = vtanh.pop %v765
    %v772 = vrot.slane %v679, 7
    %v774 = vmul.f32 %v769, %v772
    %776 = vrot.lane.b32.xlu0 %v770, 64
    %v777 = vpop.permute.xlu0 %776
    %v779 = vmul.f32 %v769, %v777
    %781 = vrot.lane.b32.xlu0 %v779, 32
    %v782 = vpop.permute.xlu0 %781
    %v784 = vadd.f32 %v774, %v782
    %v785 = vtanh.pop %v784
    %787 = vrot.lane.b32.xlu0 %v785, 64
    %v788 = vpop.permute.xlu0 %787
    %v790 = vmul.f32 %v769, %v788
    %v792 = vrot.slane %v790, 6
    %793 = vrot.lane.b32.xlu0 %v792, 32
    %v794 = vpop.permute.xlu0 %793
    %v795 = vsel %vm65, %v794, 0
    %797 = vmatprep.subr.mxu0 0.0
    %798 = vmatpush1.msra.mxu0 %v43
    %799 = vmatprep.subr.mxu0 0.0
    %800 = vmatpush1.msra.mxu0 %v44
    %801 = vmatprep.subr.mxu0 0.0
    %802 = vmatpush1.msra.mxu0 %v45
    %803 = vmatprep.subr.mxu0 0.0
    %804 = vmatpush1.msra.mxu0 %v46
    %805 = vmatprep.subr.mxu0 0.0
    %806 = vmatpush1.msra.mxu0 0.0
    %807 = vmatprep.subr.mxu0 0.0
    %808 = vmatpush1.msra.mxu0 0.0
    %809 = vmatprep.subr.mxu0 0.0
    %810 = vmatpush1.msra.mxu0 0.0
    %811 = vmatprep.subr.mxu0 0.0
    %812 = vmatpush1.msra.mxu0 0.0
    %813 = vmatprep.subr.mxu0 0.0
    %814 = vmatpush1.msra.mxu0 0.0
    %815 = vmatprep.subr.mxu0 0.0
    %816 = vmatpush1.msra.mxu0 0.0
    %817 = vmatprep.subr.mxu0 0.0
    %818 = vmatpush1.msra.mxu0 0.0
    %819 = vmatprep.subr.mxu0 0.0
    %820 = vmatpush1.msra.mxu0 0.0
    %821 = vmatprep.subr.mxu0 0.0
    %822 = vmatpush1.msra.mxu0 0.0
    %823 = vmatprep.subr.mxu0 0.0
    %824 = vmatpush1.msra.mxu0 0.0
    %825 = vmatprep.subr.mxu0 0.0
    %826 = vmatpush1.msra.mxu0 0.0
    %827 = vmatprep.subr.mxu0 0.0
    %828 = vmatpush1.msra.mxu0 0.0
    %829 = vmatprep.subr.mxu0 0.0
    %830 = vmatpush1.msra.mxu0 0.0
    %831 = vmatprep.subr.mxu0 0.0
    %832 = vmatpush1.msra.mxu0 0.0
    %833 = vmatprep.subr.mxu0 0.0
    %834 = vmatpush1.msra.mxu0 0.0
    %835 = vmatprep.subr.mxu0 0.0
    %836 = vmatpush1.msra.mxu0 0.0
    %837 = vmatprep.subr.mxu0 0.0
    %838 = vmatpush1.msra.mxu0 0.0
    %839 = vmatprep.subr.mxu0 0.0
    %840 = vmatpush1.msra.mxu0 0.0
    %841 = vmatprep.subr.mxu0 0.0
    %842 = vmatpush1.msra.mxu0 0.0
    %843 = vmatprep.subr.mxu0 0.0
    %844 = vmatpush1.msra.mxu0 0.0
    %845 = vmatprep.subr.mxu0 0.0
    %846 = vmatpush1.msra.mxu0 0.0
    %847 = vmatprep.subr.mxu0 0.0
    %848 = vmatpush1.msra.mxu0 0.0
    %849 = vmatprep.subr.mxu0 0.0
    %850 = vmatpush1.msra.mxu0 0.0
    %851 = vmatprep.subr.mxu0 0.0
    %852 = vmatpush1.msra.mxu0 0.0
    %853 = vmatprep.subr.mxu0 0.0
    %854 = vmatpush1.msra.mxu0 0.0
    %855 = vmatprep.subr.mxu0 0.0
    %856 = vmatpush1.msra.mxu0 0.0
    %857 = vmatprep.subr.mxu0 0.0
    %858 = vmatpush1.msra.mxu0 0.0
    %859 = vmatprep.subr.mxu0 0.0
    %860 = vmatpush1.msra.mxu0 0.0
    %861 = vmatprep.mubr.f32.mxu0 0.0
    %862 = vmatmul.mubr.f32.gmra.mrb[0].mxu0 %v795
    %v863 = vpop.f32.mrb[0].mxu0
    %v864 = vadd.f32 0.0, %v863
    %v865 = vpop.f32.mrb[0].mxu0
    %866 = vdwg.mxu0
    %v868 = vrot.slane %v864, 1
    %v870 = vadd.f32 %v64, %v868
    %v871 = vmul.f32 %v870, 0.5
    %v872 = vtanh.pop %v871
    %v873 = vmul.f32 %v872, 0.5
    %v874 = vadd.f32 %v873, 0.5
    %v875 = vtanh.pop %v870
    %v877 = vrot.slane %v784, 7
    %v879 = vmul.f32 %v874, %v877
    %881 = vrot.lane.b32.xlu0 %v875, 64
    %v882 = vpop.permute.xlu0 %881
    %v884 = vmul.f32 %v874, %v882
    %886 = vrot.lane.b32.xlu0 %v884, 32
    %v887 = vpop.permute.xlu0 %886
    %v889 = vadd.f32 %v879, %v887
    %v890 = vtanh.pop %v889
    %892 = vrot.lane.b32.xlu0 %v890, 64
    %v893 = vpop.permute.xlu0 %892
    %v895 = vmul.f32 %v874, %v893
    %v896 = vld [vmem:[#allocation5] sm:$0xff]
    %v897 = vld [vmem:[#allocation5 + $0x8] sm:$0xff]
    %v898 = vld [vmem:[#allocation5 + $0x10] sm:$0xff]
    %v899 = vld [vmem:[#allocation5 + $0x18] sm:$0xff]
    %v900 = vld [vmem:[#allocation5 + $0x20] sm:$0x1]
    %v902 = vrot.slane %v895, 7
    %903 = vrot.lane.b32.xlu0 %v902, 32
    %v904 = vpop.permute.xlu0 %903
    %v905 = vsel %vm65, %v904, 0
    %907 = vmatprep.subr.mxu0 0.0
    %908 = vmatpush1.msra.mxu0 %v896
    %909 = vmatprep.subr.mxu0 0.0
    %910 = vmatpush1.msra.mxu0 %v897
    %911 = vmatprep.subr.mxu0 0.0
    %912 = vmatpush1.msra.mxu0 %v898
    %913 = vmatprep.subr.mxu0 0.0
    %914 = vmatpush1.msra.mxu0 %v899
    %915 = vmatprep.subr.mxu0 0.0
    %916 = vmatpush1.msra.mxu0 0.0
    %917 = vmatprep.subr.mxu0 0.0
    %918 = vmatpush1.msra.mxu0 0.0
    %919 = vmatprep.subr.mxu0 0.0
    %920 = vmatpush1.msra.mxu0 0.0
    %921 = vmatprep.subr.mxu0 0.0
    %922 = vmatpush1.msra.mxu0 0.0
    %923 = vmatprep.subr.mxu0 0.0
    %924 = vmatpush1.msra.mxu0 0.0
    %925 = vmatprep.subr.mxu0 0.0
    %926 = vmatpush1.msra.mxu0 0.0
    %927 = vmatprep.subr.mxu0 0.0
    %928 = vmatpush1.msra.mxu0 0.0
    %929 = vmatprep.subr.mxu0 0.0
    %930 = vmatpush1.msra.mxu0 0.0
    %931 = vmatprep.subr.mxu0 0.0
    %932 = vmatpush1.msra.mxu0 0.0
    %933 = vmatprep.subr.mxu0 0.0
    %934 = vmatpush1.msra.mxu0 0.0
    %935 = vmatprep.subr.mxu0 0.0
    %936 = vmatpush1.msra.mxu0 0.0
    %937 = vmatprep.subr.mxu0 0.0
    %938 = vmatpush1.msra.mxu0 0.0
    %939 = vmatprep.subr.mxu0 0.0
    %940 = vmatpush1.msra.mxu0 0.0
    %941 = vmatprep.subr.mxu0 0.0
    %942 = vmatpush1.msra.mxu0 0.0
    %943 = vmatprep.subr.mxu0 0.0
    %944 = vmatpush1.msra.mxu0 0.0
    %945 = vmatprep.subr.mxu0 0.0
    %946 = vmatpush1.msra.mxu0 0.0
    %947 = vmatprep.subr.mxu0 0.0
    %948 = vmatpush1.msra.mxu0 0.0
    %949 = vmatprep.subr.mxu0 0.0
    %950 = vmatpush1.msra.mxu0 0.0
    %951 = vmatprep.subr.mxu0 0.0
    %952 = vmatpush1.msra.mxu0 0.0
    %953 = vmatprep.subr.mxu0 0.0
    %954 = vmatpush1.msra.mxu0 0.0
    %955 = vmatprep.subr.mxu0 0.0
    %956 = vmatpush1.msra.mxu0 0.0
    %957 = vmatprep.subr.mxu0 0.0
    %958 = vmatpush1.msra.mxu0 0.0
    %959 = vmatprep.subr.mxu0 0.0
    %960 = vmatpush1.msra.mxu0 0.0
    %961 = vmatprep.subr.mxu0 0.0
    %962 = vmatpush1.msra.mxu0 0.0
    %963 = vmatprep.subr.mxu0 0.0
    %964 = vmatpush1.msra.mxu0 0.0
    %965 = vmatprep.subr.mxu0 0.0
    %966 = vmatpush1.msra.mxu0 0.0
    %967 = vmatprep.subr.mxu0 0.0
    %968 = vmatpush1.msra.mxu0 0.0
    %969 = vmatprep.subr.mxu0 0.0
    %970 = vmatpush1.msra.mxu0 0.0
    %971 = vmatprep.mubr.f32.mxu0 0.0
    %972 = vmatmul.mubr.f32.gmra.mrb[0].mxu0 %v905
    %v973 = vpop.f32.mrb[0].mxu0
    %v974 = vadd.f32 %v900, %v973
    %v975 = vpop.f32.mrb[0].mxu0
    %976 = vdwg.mxu0
    %977 = vrot.lane.b32.xlu0 %v895, 32
    %v978 = vpop.permute.xlu0 %977
    %v981 = vrot.slane %v974, 1
    %982 = vrot.lane.b32.xlu0 %v981, 64
    %v983 = vpop.permute.xlu0 %982
    %v985 = vsel %vm65, %v978, %v889
    %vm986 = vcmask 523264
    %v987 = vsel %vm986, %v985, %v983
    %988 = vst [vmem:[#allocation7 - $0x7] sm:$0x80] %v987
    // Predicated region
    $region22: #{tpu_custom_call.1} parent=1 // pred_check
      _
    $region23: #{tpu_custom_call.1} parent=1 // pred_check_branch
      %990 = sbr.rel (0) target = $region25
    $region24: #{tpu_custom_call.1} parent=1 // pred_region
      %s992 = ssub.s32 16, 16
      %993 = vsyncadd [#allocation4], %s992
      %s995 = sshll.u32 [#allocation7], 4
      %s996 = int_to_ptr.vmem [resolvable:$true] %s995
      %998 = dma.vmem_to_hbm [thread:$0]  %s996, 16, %s3, [#allocation4]
    $region25: #{tpu_custom_call.1} parent=1 // pred_fallthru
      _
    // Predicated region
    $region26: #{tpu_custom_call.1} parent=1 // pred_check
      _
    $region27: #{tpu_custom_call.1} parent=1 // pred_check_branch
      %1000 = sbr.rel (0) target = $region29
    $region28: #{tpu_custom_call.1} parent=1 // pred_region
      %1001 = dma.done [#allocation4], 16
    $region29: #{tpu_custom_call.1} parent=1 // pred_fallthru
      _
    %1002 = vsyncpa [#allocation3], 1
    %1003 = vsyncpa [#allocation6], 1
    %1004 = vsyncpa [#allocation4], 1

</llo_original>
